<compile_context>
chip_gen: v7x
topology: tpu7x:2x2x1
jax: 0.10.0
libtpu: 0.0.40
codegen_flags: <defaults>
</compile_context>

<pallas_src>
import jax
import jax.numpy as jnp
from jax.experimental import pallas as pl
from jax.experimental.pallas import tpu as pltpu


_SQRT_HALF = 0.7071067811865476


def _erf_approx(z):
    """Abramowitz & Stegun 7.1.26 rational approximation of erf (|err| < 1.5e-7).

    Built from exp / reciprocal / mul / add / where so it lowers cleanly in
    Mosaic; the divide and exp both go to the EUP slot.
    """
    p = 0.3275911
    a1, a2, a3, a4, a5 = (
        0.254829592,
        -0.284496736,
        1.421413741,
        -1.453152027,
        1.061405429,
    )
    az = jnp.abs(z)
    t = pl.reciprocal(1.0 + p * az, approx=True)   # EUP, effectively free
    poly = ((((a5 * t + a4) * t + a3) * t + a2) * t + a1) * t
    y = 1.0 - poly * jnp.exp(-az * az)             # exp also on the EUP
    return jnp.where(z >= 0.0, y, -y)


def _gelu_exact(x):
    """Exact (erf-based) GELU, matching PyTorch nn.GELU() default."""
    return 0.5 * x * (1.0 + _erf_approx(x * _SQRT_HALF))


def mlp_kernel(x_ref, w1_ref, b1_ref, w2_ref, b2_ref, o_ref):
    """Fused fc1 -> GELU -> fc2 on one M-tile, computed transposed.

    x_ref:  (tm, C_in)   f32  (activation tile, lane axis = C_in = full dim)
    w1_ref: (H, C_in)    bf16 (fc1 weight, PyTorch layout, resident)
    b1_ref: (H, 1)       f32
    w2_ref: (C_out, H)   bf16 (fc2 weight, PyTorch layout, resident)
    b2_ref: (C_out, 1)   f32
    o_ref:  (C_out, tm)  f32  (lane axis = tm, multiple of 128 -> full vst)
    """
    x = x_ref[...].astype(jnp.bfloat16)      # (tm, C_in)
    w1 = w1_ref[...]                         # (H, C_in)
    w2 = w2_ref[...]                         # (C_out, H)

    # h = W1 @ X^T : contract on C_in (NT matmul, no materialized transpose).
    h = jax.lax.dot_general(
        w1, x,
        dimension_numbers=(((1,), (1,)), ((), ())),
        preferred_element_type=jnp.float32,
    )                                        # (H, tm), f32 accumulator
    h = h + b1_ref[...]                      # lane-broadcast of (H, 1)
    h = _gelu_exact(h)                       # f32 epilogue (VPU + EUP)
    # Dropout(p=0.0) == identity.

    # y^T = W2 @ h : standard matmul, result stays lane-dense on tm.
    y = jax.lax.dot_general(
        w2, h.astype(jnp.bfloat16),
        dimension_numbers=(((1,), (0,)), ((), ())),
        preferred_element_type=jnp.float32,
    )                                        # (C_out, tm)
    y = y + b2_ref[...]
    o_ref[...] = y.astype(o_ref.dtype)


def _pick_m_tile_and_pad(m):
    """Choose (m_tile, padded_M).

    * padded_M is a multiple of 128 so the output lane axis is lane-dense.
    * m_tile is the largest of {2048, ..., 128} dividing padded_M while
      keeping >= 2 grid steps (so the 'parallel' axis can split across the
      two v7x TensorCores; bigger tiles amortize the ~0.35us per-step cost).
    """
    m_pad = ((m + 127) // 128) * 128
    if m_pad <= 128:
        return m_pad, m_pad
    for t in (2048, 1024, 512, 256, 128):
        if m_pad % t == 0 and m_pad // t >= 2:
            return t, m_pad
    return 128, m_pad


@jax.jit
def mlp_forward(x, fc1_w, fc1_b, fc2_w, fc2_b):
    """x: (B, N, C_in) f32; PyTorch-layout weights fc*_w: (out, in), fc*_b: (out,)."""
    B, N, C_in = x.shape
    H = fc1_w.shape[0]
    C_out = fc2_w.shape[0]
    M = B * N

    # Free, contiguous reshape of the activation (no HBM transpose).
    x2 = x.reshape(M, C_in).astype(jnp.float32)

    tm, M_pad = _pick_m_tile_and_pad(M)
    if M_pad != M:
        x2 = jnp.pad(x2, ((0, M_pad - M), (0, 0)))

    # Weights in native (out, in) layout; bf16 for single-pass MXU + half the
    # resident VMEM.  Biases stay f32 (added to the f32 accumulator).
    w1 = fc1_w.astype(jnp.bfloat16)               # (H, C_in)
    w2 = fc2_w.astype(jnp.bfloat16)               # (C_out, H)
    b1 = fc1_b.reshape(H, 1).astype(jnp.float32)
    b2 = fc2_b.reshape(C_out, 1).astype(jnp.float32)

    grid = (M_pad // tm,)

    out_t = pl.pallas_call(
        mlp_kernel,
        out_shape=jax.ShapeDtypeStruct((C_out, M_pad), jnp.float32),
        grid_spec=pltpu.PrefetchScalarGridSpec(
            num_scalar_prefetch=0,
            grid=grid,
            in_specs=[
                pl.BlockSpec((tm, C_in), lambda i: (i, 0)),    # activation tile
                pl.BlockSpec((H, C_in), lambda i: (0, 0)),     # fc1 weight (resident)
                pl.BlockSpec((H, 1), lambda i: (0, 0)),        # fc1 bias
                pl.BlockSpec((C_out, H), lambda i: (0, 0)),    # fc2 weight (resident)
                pl.BlockSpec((C_out, 1), lambda i: (0, 0)),    # fc2 bias
            ],
            out_specs=pl.BlockSpec((C_out, tm), lambda i: (0, i)),
        ),
        compiler_params=pltpu.CompilerParams(
            dimension_semantics=("parallel",),        # independent M-tiles
            vmem_limit_bytes=48 * 1024 * 1024,        # > v5e/v6e defaults, < v7x physical
        ),
    )(x2, w1, b1, w2, b2)

    # Tiny output slab: transpose / un-pad / reshape in XLA, outside the kernel.
    out2 = out_t[:, :M].T                      # (M, C_out)
    return out2.reshape(B, N, C_out)


def reference_forward(x, fc1_w, fc1_b, fc2_w, fc2_b):
    """Pure-JAX f32 reference with exact erf-GELU (PyTorch semantics)."""
    h = jnp.dot(x, fc1_w.T, precision=jax.lax.Precision.HIGHEST) + fc1_b
    h = 0.5 * h * (1.0 + jax.scipy.special.erf(h * _SQRT_HALF))
    y = jnp.dot(h, fc2_w.T, precision=jax.lax.Precision.HIGHEST) + fc2_b
    return y


if __name__ == "__main__":
    # Small shapes consistent with the module's forward: (B, N, C)
    B, N = 2, 256            # N = patch_size * patch_size (16 * 16)
    in_features = 32
    hidden_features = 64
    out_features = 32        # out_features defaults to in_features

    key = jax.random.PRNGKey(0)
    kx, k1w, k1b, k2w, k2b = jax.random.split(key, 5)

    x = jax.random.normal(kx, (B, N, in_features), dtype=jnp.float32)

    # PyTorch nn.Linear default init: U(-1/sqrt(fan_in), 1/sqrt(fan_in))
    bound1 = 1.0 / (in_features ** 0.5)
    bound2 = 1.0 / (hidden_features ** 0.5)
    fc1_w = jax.random.uniform(
        k1w, (hidden_features, in_features), jnp.float32, -bound1, bound1)
    fc1_b = jax.random.uniform(
        k1b, (hidden_features,), jnp.float32, -bound1, bound1)
    fc2_w = jax.random.uniform(
        k2w, (out_features, hidden_features), jnp.float32, -bound2, bound2)
    fc2_b = jax.random.uniform(
        k2b, (out_features,), jnp.float32, -bound2, bound2)

    out = mlp_forward(x, fc1_w, fc1_b, fc2_w, fc2_b)
    out = jax.block_until_ready(out)

    ref = reference_forward(x, fc1_w, fc1_b, fc2_w, fc2_b)
    assert out.shape == (B, N, out_features)
    # bf16-in / f32-accumulate matmuls vs. an f32 HIGHEST reference: allow a
    # bf16-appropriate tolerance (outputs are O(1) here).
    max_err = float(jnp.max(jnp.abs(out - ref)))
    assert max_err < 5e-2, f"max abs err {max_err}"

    print("KERNEL_OK")
</pallas_src>

<mosaic_0001>
module attributes {stable_mosaic.version = 11 : i64} {
  func.func @mlp_kernel(%arg0: i32, %arg1: memref<256x32xf32, #tpu.memory_space<vmem>>, %arg2: memref<64x32xbf16, #tpu.memory_space<vmem>>, %arg3: memref<64x1xf32, #tpu.memory_space<vmem>>, %arg4: memref<32x64xbf16, #tpu.memory_space<vmem>>, %arg5: memref<32x1xf32, #tpu.memory_space<vmem>>, %arg6: memref<32x256xf32, #tpu.memory_space<vmem>>) attributes {dimension_semantics = [#tpu.dimension_semantics<parallel>], iteration_bounds = array<i64: 2>, scalar_prefetch = 0 : i64, scratch_operands = 0 : i64, tpu.core_type = #tpu.core_type<tc>, window_params = [{transform_indices = @transform_0, window_bounds = array<i64: 256, 32>}, {pipeline_mode = #tpu.pipeline_mode<synchronous>, transform_indices = @transform_1, window_bounds = array<i64: 64, 32>}, {pipeline_mode = #tpu.pipeline_mode<synchronous>, transform_indices = @transform_2, window_bounds = array<i64: 64, 1>}, {pipeline_mode = #tpu.pipeline_mode<synchronous>, transform_indices = @transform_3, window_bounds = array<i64: 32, 64>}, {pipeline_mode = #tpu.pipeline_mode<synchronous>, transform_indices = @transform_4, window_bounds = array<i64: 32, 1>}, {transform_indices = @transform_5, window_bounds = array<i64: 32, 256>}]} {
    %c0 = arith.constant 0 : index
    %c0_0 = arith.constant 0 : index
    %0 = vector.load %arg1[%c0, %c0_0] : memref<256x32xf32, #tpu.memory_space<vmem>>, vector<256x32xf32>
    %1 = arith.truncf %0 : vector<256x32xf32> to vector<256x32xbf16>
    %c0_1 = arith.constant 0 : index
    %c0_2 = arith.constant 0 : index
    %2 = vector.load %arg2[%c0_1, %c0_2] : memref<64x32xbf16, #tpu.memory_space<vmem>>, vector<64x32xbf16>
    %c0_3 = arith.constant 0 : index
    %c0_4 = arith.constant 0 : index
    %3 = vector.load %arg4[%c0_3, %c0_4] : memref<32x64xbf16, #tpu.memory_space<vmem>>, vector<32x64xbf16>
    %cst = arith.constant dense<0.000000e+00> : vector<64x256xf32>
    %4 = tpu.matmul %2, %1, %cst {dimension_numbers = #tpu.dot_dimension_numbers<[1], [1], [0], [0], [0, 0, 1, 0], [], []>} : vector<64x32xbf16>, vector<256x32xbf16>, vector<64x256xf32> -> vector<64x256xf32>
    %c0_5 = arith.constant 0 : index
    %c0_6 = arith.constant 0 : index
    %5 = vector.load %arg3[%c0_5, %c0_6] : memref<64x1xf32, #tpu.memory_space<vmem>>, vector<64x1xf32>
    %6 = vector.broadcast %5 : vector<64x1xf32> to vector<64x256xf32>
    %7 = arith.addf %4, %6 : vector<64x256xf32>
    %cst_7 = arith.constant 5.000000e-01 : f32
    %8 = vector.broadcast %cst_7 : f32 to vector<64x256xf32>
    %9 = arith.mulf %8, %7 : vector<64x256xf32>
    %cst_8 = arith.constant 0.707106769 : f32
    %10 = vector.broadcast %cst_8 : f32 to vector<64x256xf32>
    %11 = arith.mulf %7, %10 : vector<64x256xf32>
    %12 = math.absf %11 : vector<64x256xf32>
    %cst_9 = arith.constant 0.327591091 : f32
    %13 = vector.broadcast %cst_9 : f32 to vector<64x256xf32>
    %14 = arith.mulf %13, %12 : vector<64x256xf32>
    %cst_10 = arith.constant 1.000000e+00 : f32
    %15 = vector.broadcast %cst_10 : f32 to vector<64x256xf32>
    %16 = arith.addf %15, %14 : vector<64x256xf32>
    %17 = tpu.reciprocal %16 {approx = true} : vector<64x256xf32> -> vector<64x256xf32>
    %cst_11 = arith.constant 1.06140542 : f32
    %18 = vector.broadcast %cst_11 : f32 to vector<64x256xf32>
    %19 = arith.mulf %18, %17 : vector<64x256xf32>
    %cst_12 = arith.constant -1.45315206 : f32
    %20 = vector.broadcast %cst_12 : f32 to vector<64x256xf32>
    %21 = arith.addf %19, %20 : vector<64x256xf32>
    %22 = arith.mulf %21, %17 : vector<64x256xf32>
    %cst_13 = arith.constant 1.42141378 : f32
    %23 = vector.broadcast %cst_13 : f32 to vector<64x256xf32>
    %24 = arith.addf %22, %23 : vector<64x256xf32>
    %25 = arith.mulf %24, %17 : vector<64x256xf32>
    %cst_14 = arith.constant -0.284496725 : f32
    %26 = vector.broadcast %cst_14 : f32 to vector<64x256xf32>
    %27 = arith.addf %25, %26 : vector<64x256xf32>
    %28 = arith.mulf %27, %17 : vector<64x256xf32>
    %cst_15 = arith.constant 0.254829586 : f32
    %29 = vector.broadcast %cst_15 : f32 to vector<64x256xf32>
    %30 = arith.addf %28, %29 : vector<64x256xf32>
    %31 = arith.mulf %30, %17 : vector<64x256xf32>
    %cst_16 = arith.constant 0.000000e+00 : f32
    %32 = vector.broadcast %cst_16 : f32 to vector<64x256xf32>
    %33 = arith.subf %32, %12 : vector<64x256xf32>
    %34 = arith.mulf %33, %12 : vector<64x256xf32>
    %35 = math.exp %34 : vector<64x256xf32>
    %36 = arith.mulf %31, %35 : vector<64x256xf32>
    %cst_17 = arith.constant 1.000000e+00 : f32
    %37 = vector.broadcast %cst_17 : f32 to vector<64x256xf32>
    %38 = arith.subf %37, %36 : vector<64x256xf32>
    %cst_18 = arith.constant 0.000000e+00 : f32
    %39 = vector.broadcast %cst_18 : f32 to vector<64x256xf32>
    %40 = arith.cmpf oge, %11, %39 : vector<64x256xf32>
    %cst_19 = arith.constant 0.000000e+00 : f32
    %41 = vector.broadcast %cst_19 : f32 to vector<64x256xf32>
    %42 = arith.subf %41, %38 : vector<64x256xf32>
    %43 = arith.select %40, %38, %42 : vector<64x256xi1>, vector<64x256xf32>
    %cst_20 = arith.constant 1.000000e+00 : f32
    %44 = vector.broadcast %cst_20 : f32 to vector<64x256xf32>
    %45 = arith.addf %44, %43 : vector<64x256xf32>
    %46 = arith.mulf %9, %45 : vector<64x256xf32>
    %47 = arith.truncf %46 : vector<64x256xf32> to vector<64x256xbf16>
    %cst_21 = arith.constant dense<0.000000e+00> : vector<32x256xf32>
    %48 = tpu.matmul %3, %47, %cst_21 {dimension_numbers = #tpu.dot_dimension_numbers<[1], [0], [0], [1], [0, 0, 1, 1], [], []>} : vector<32x64xbf16>, vector<64x256xbf16>, vector<32x256xf32> -> vector<32x256xf32>
    %c0_22 = arith.constant 0 : index
    %c0_23 = arith.constant 0 : index
    %49 = vector.load %arg5[%c0_22, %c0_23] : memref<32x1xf32, #tpu.memory_space<vmem>>, vector<32x1xf32>
    %50 = vector.broadcast %49 : vector<32x1xf32> to vector<32x256xf32>
    %51 = arith.addf %48, %50 : vector<32x256xf32>
    %c0_24 = arith.constant 0 : index
    %c0_25 = arith.constant 0 : index
    %52 = vector.load %arg6[%c0_24, %c0_25] : memref<32x256xf32, #tpu.memory_space<vmem>>, vector<32x256xf32>
    tpu.vector_store %arg6[%c0_24, %c0_25], %51 {strides = array<i32>} : memref<32x256xf32, #tpu.memory_space<vmem>>, vector<32x256xf32>,
    return
  }
  func.func @transform_0(%arg0: i32) -> (i32, i32) {
    %c0_i32 = arith.constant 0 : i32
    %c0_i32_0 = arith.constant 0 : i32
    return %arg0, %c0_i32 : i32, i32
  }
  func.func @transform_1(%arg0: i32) -> (i32, i32) {
    %c0_i32 = arith.constant 0 : i32
    %c0_i32_0 = arith.constant 0 : i32
    %c0_i32_1 = arith.constant 0 : i32
    return %c0_i32, %c0_i32_0 : i32, i32
  }
  func.func @transform_2(%arg0: i32) -> (i32, i32) {
    %c0_i32 = arith.constant 0 : i32
    %c0_i32_0 = arith.constant 0 : i32
    %c0_i32_1 = arith.constant 0 : i32
    return %c0_i32, %c0_i32_0 : i32, i32
  }
  func.func @transform_3(%arg0: i32) -> (i32, i32) {
    %c0_i32 = arith.constant 0 : i32
    %c0_i32_0 = arith.constant 0 : i32
    %c0_i32_1 = arith.constant 0 : i32
    return %c0_i32, %c0_i32_0 : i32, i32
  }
  func.func @transform_4(%arg0: i32) -> (i32, i32) {
    %c0_i32 = arith.constant 0 : i32
    %c0_i32_0 = arith.constant 0 : i32
    %c0_i32_1 = arith.constant 0 : i32
    return %c0_i32, %c0_i32_0 : i32, i32
  }
  func.func @transform_5(%arg0: i32) -> (i32, i32) {
    %c0_i32 = arith.constant 0 : i32
    %c0_i32_0 = arith.constant 0 : i32
    return %c0_i32, %arg0 : i32, i32
  }
}

</mosaic_0001>

<llo_original>
// kernel: mlp_forward.1
$region0: #{mlp_forward.1}
  #allocation0 [shape = 'u32[]', space=smem, size = 0x4, offset = 0x4, fixed_abs, tag = 'smem constant byte address 0x4 - core index']
  #allocation1 [shape = 'u32[144,128]{1,0:T(1,128)}', space=vmem, size = 0x12000, scoped, tag = 'internal scratch']
  %s0 = inlined_call_operand.vmem [shape: f32[512,32], index: 0, kind: input, shape index: {}]
  %s1 = inlined_call_operand.vmem [shape: bf16[64,32], index: 1, kind: input, shape index: {}]
  %s2 = inlined_call_operand.vmem [shape: f32[64,1], index: 2, kind: input, shape index: {}]
  %s3 = inlined_call_operand.vmem [shape: bf16[32,64], index: 3, kind: input, shape index: {}]
  %s4 = inlined_call_operand.vmem [shape: f32[32,1], index: 4, kind: input, shape index: {}]
  %s5 = inlined_call_operand.vmem [shape: f32[32,512], index: 5, kind: output, shape index: {}]
  %s6 = sld [smem:[#allocation0]]
  $region72: #{mlp_forward.1} parent=0
    _
  %s8 = ssub.s32 1, %s6
  %s9 = scalar_select 0, %s8, %s6
  $region1: #{mlp_forward.1} parent=0
    #allocation2 [shape = 'u8[65536]{0}', space=vmem, size = 0x10000, scoped, tag = 'output window, operand 0']
    loop: start=0, step=1, limit=4
    $region2: #{mlp_forward.1} parent=1 // loop_pre_header
      _
    $region3: #{mlp_forward.1} parent=1 // loop_header
      %s11 = sphi 0, %s15
      %p12 = scmp.ge.s32.totalorder %s11, 4
      %s21 = sphi 0, %s23
      %s24 = sphi 0, %s21
      %s25 = sphi 0, %s24
      %s41 = sphi 0, %s25
      %s45 = sphi 0, %s45
      %s47 = sphi 0, %s45
      %s48 = sphi 0, %s47
      %s62 = sphi 0, %s48
      %s66 = sphi 0, %s66
      %s68 = sphi 0, %s66
      %s69 = sphi 0, %s68
      %s83 = sphi 0, %s69
      %s87 = sphi 0, %s87
      %s89 = sphi 0, %s87
      %s90 = sphi 0, %s89
      %s104 = sphi 0, %s90
      %s108 = sphi 0, %s108
      %s110 = sphi 0, %s108
      %s111 = sphi 0, %s110
      %s125 = sphi 0, %s111
      %s131 = sphi 0, %s133
      %s134 = sphi 0, %s131
      %s135 = sphi 0, %s134
      %s151 = sphi 0, %s135
    $region4: #{mlp_forward.1} parent=1 // loop_header_branch
      %14 = sbr.rel (%p12) target = $region8
    $region5: #{mlp_forward.1} parent=1 // loop_body
      %s16 = ssub.s32 %s11, 1
      %s17 = ssub.s32 %s11, 2
      %s18 = sadd.s32 %s11, 1
      %s19 = ssub.s32 %s11, %s18
      %p20 = scmp.eq.s32.totalorder %s19, 0
      %s22 = sadd.s32 %s21, 1
      %s23 = scalar_select %p20, %s21, %s22
      %p26 = pneg %p20
      %p27 = scmp.eq.s32.totalorder %s11, 1
      %p28 = por %p26, %p27
      %p29 = scmp.ne.s32.totalorder %s21, %s24
      %p30 = scmp.eq.s32.totalorder %s11, 0
      %p31 = por %p29, %p30
      %p32 = scmp.ne.s32.totalorder %s21, %s24
      %p33 = scmp.eq.s32.totalorder %s16, 1
      %p34 = por %p32, %p33
      %p35 = scmp.ne.s32.totalorder %s24, %s25
      %p36 = scmp.eq.s32.totalorder %s16, 0
      %p37 = por %p35, %p36
      %p38 = scmp.ne.s32.totalorder %s24, %s25
      %p39 = scmp.eq.s32.totalorder %s17, 1
      %p40 = por %p38, %p39
      %p42 = scmp.ne.s32.totalorder %s25, %s41
      %p43 = scmp.eq.s32.totalorder %s17, 0
      %p44 = por %p42, %p43
      %s46 = sadd.s32 %s45, 1
      %p49 = scmp.eq.s32.totalorder %s11, 1
      %p50 = scmp.ne.s32.totalorder %s45, %s47
      %p51 = scmp.eq.s32.totalorder %s11, 0
      %p52 = por %p50, %p51
      %p53 = scmp.ne.s32.totalorder %s45, %s47
      %p54 = scmp.eq.s32.totalorder %s16, 1
      %p55 = por %p53, %p54
      %p56 = scmp.ne.s32.totalorder %s47, %s48
      %p57 = scmp.eq.s32.totalorder %s16, 0
      %p58 = por %p56, %p57
      %p59 = scmp.ne.s32.totalorder %s47, %s48
      %p60 = scmp.eq.s32.totalorder %s17, 1
      %p61 = por %p59, %p60
      %p63 = scmp.ne.s32.totalorder %s48, %s62
      %p64 = scmp.eq.s32.totalorder %s17, 0
      %p65 = por %p63, %p64
      %s67 = sadd.s32 %s66, 1
      %p70 = scmp.eq.s32.totalorder %s11, 1
      %p71 = scmp.ne.s32.totalorder %s66, %s68
      %p72 = scmp.eq.s32.totalorder %s11, 0
      %p73 = por %p71, %p72
      %p74 = scmp.ne.s32.totalorder %s66, %s68
      %p75 = scmp.eq.s32.totalorder %s16, 1
      %p76 = por %p74, %p75
      %p77 = scmp.ne.s32.totalorder %s68, %s69
      %p78 = scmp.eq.s32.totalorder %s16, 0
      %p79 = por %p77, %p78
      %p80 = scmp.ne.s32.totalorder %s68, %s69
      %p81 = scmp.eq.s32.totalorder %s17, 1
      %p82 = por %p80, %p81
      %p84 = scmp.ne.s32.totalorder %s69, %s83
      %p85 = scmp.eq.s32.totalorder %s17, 0
      %p86 = por %p84, %p85
      %s88 = sadd.s32 %s87, 1
      %p91 = scmp.eq.s32.totalorder %s11, 1
      %p92 = scmp.ne.s32.totalorder %s87, %s89
      %p93 = scmp.eq.s32.totalorder %s11, 0
      %p94 = por %p92, %p93
      %p95 = scmp.ne.s32.totalorder %s87, %s89
      %p96 = scmp.eq.s32.totalorder %s16, 1
      %p97 = por %p95, %p96
      %p98 = scmp.ne.s32.totalorder %s89, %s90
      %p99 = scmp.eq.s32.totalorder %s16, 0
      %p100 = por %p98, %p99
      %p101 = scmp.ne.s32.totalorder %s89, %s90
      %p102 = scmp.eq.s32.totalorder %s17, 1
      %p103 = por %p101, %p102
      %p105 = scmp.ne.s32.totalorder %s90, %s104
      %p106 = scmp.eq.s32.totalorder %s17, 0
      %p107 = por %p105, %p106
      %s109 = sadd.s32 %s108, 1
      %p112 = scmp.eq.s32.totalorder %s11, 1
      %p113 = scmp.ne.s32.totalorder %s108, %s110
      %p114 = scmp.eq.s32.totalorder %s11, 0
      %p115 = por %p113, %p114
      %p116 = scmp.ne.s32.totalorder %s108, %s110
      %p117 = scmp.eq.s32.totalorder %s16, 1
      %p118 = por %p116, %p117
      %p119 = scmp.ne.s32.totalorder %s110, %s111
      %p120 = scmp.eq.s32.totalorder %s16, 0
      %p121 = por %p119, %p120
      %p122 = scmp.ne.s32.totalorder %s110, %s111
      %p123 = scmp.eq.s32.totalorder %s17, 1
      %p124 = por %p122, %p123
      %p126 = scmp.ne.s32.totalorder %s111, %s125
      %p127 = scmp.eq.s32.totalorder %s17, 0
      %p128 = por %p126, %p127
      %s129 = ssub.s32 %s11, %s18
      %p130 = scmp.eq.s32.totalorder %s129, 0
      %s132 = sadd.s32 %s131, 1
      %s133 = scalar_select %p130, %s131, %s132
      %p136 = pneg %p130
      %p137 = scmp.eq.s32.totalorder %s11, 1
      %p138 = por %p136, %p137
      %p139 = scmp.ne.s32.totalorder %s131, %s134
      %p140 = scmp.eq.s32.totalorder %s11, 0
      %p141 = por %p139, %p140
      %p142 = scmp.ne.s32.totalorder %s131, %s134
      %p143 = scmp.eq.s32.totalorder %s16, 1
      %p144 = por %p142, %p143
      %p145 = scmp.ne.s32.totalorder %s134, %s135
      %p146 = scmp.eq.s32.totalorder %s16, 0
      %p147 = por %p145, %p146
      %p148 = scmp.ne.s32.totalorder %s134, %s135
      %p149 = scmp.eq.s32.totalorder %s17, 1
      %p150 = por %p148, %p149
      %p152 = scmp.ne.s32.totalorder %s135, %s151
      %p153 = scmp.eq.s32.totalorder %s17, 0
      %p154 = por %p152, %p153
      %p155 = scmp.le.s32.totalorder 1, %s11
      %p156 = scmp.lt.s32.totalorder %s11, 3
      %p157 = pnand %p155, %p156
      %p158 = pneg %p157
      // Predicated region
      $region9: #{mlp_forward.1} parent=5 // pred_check
        _
      $region10: #{mlp_forward.1} parent=5 // pred_check_branch
        %160 = sbr.rel (%p157) target = $region12
      $region11: #{mlp_forward.1} parent=5 // pred_region
        %s161 = ssub.s32 %s11, 1
        // Predicated region
        $region13: #{mlp_forward.1} parent=11 // pred_check
          %p162 = pneg %p58
        $region14: #{mlp_forward.1} parent=11 // pred_check_branch
          %164 = sbr.rel (%p162) target = $region16
        $region15: #{mlp_forward.1} parent=11 // pred_region
          _
        $region16: #{mlp_forward.1} parent=11 // pred_fallthru
          _
        // Predicated region
        $region17: #{mlp_forward.1} parent=11 // pred_check
          %p165 = pneg %p79
        $region18: #{mlp_forward.1} parent=11 // pred_check_branch
          %167 = sbr.rel (%p165) target = $region20
        $region19: #{mlp_forward.1} parent=11 // pred_region
          _
        $region20: #{mlp_forward.1} parent=11 // pred_fallthru
          _
        // Predicated region
        $region21: #{mlp_forward.1} parent=11 // pred_check
          %p168 = pneg %p100
        $region22: #{mlp_forward.1} parent=11 // pred_check_branch
          %170 = sbr.rel (%p168) target = $region24
        $region23: #{mlp_forward.1} parent=11 // pred_region
          _
        $region24: #{mlp_forward.1} parent=11 // pred_fallthru
          _
        // Predicated region
        $region25: #{mlp_forward.1} parent=11 // pred_check
          %p171 = pneg %p121
        $region26: #{mlp_forward.1} parent=11 // pred_check_branch
          %173 = sbr.rel (%p171) target = $region28
        $region27: #{mlp_forward.1} parent=11 // pred_region
          _
        $region28: #{mlp_forward.1} parent=11 // pred_fallthru
          _
      $region12: #{mlp_forward.1} parent=5 // pred_fallthru
        _
      %p174 = scmp.lt.s32.totalorder %s11, 2
      // Predicated region
      $region29: #{mlp_forward.1} parent=5 // pred_check
        %p175 = pneg %p174
      $region30: #{mlp_forward.1} parent=5 // pred_check_branch
        %177 = sbr.rel (%p175) target = $region32
      $region31: #{mlp_forward.1} parent=5 // pred_region
        // Predicated region
        $region33: #{mlp_forward.1} parent=31 // pred_check
          %p178 = pneg %p31
        $region34: #{mlp_forward.1} parent=31 // pred_check_branch
          %180 = sbr.rel (%p178) target = $region36
        $region35: #{mlp_forward.1} parent=31 // pred_region
          %s181 = smul.u32 32, %s11
          %p182 = scmp.lt.s32.totalorder %s181, 63
          %s183 = scalar_select %p182, %s181, 63
          %s184 = smul.addr %s183, 8
          %s185 = scalar_lea.vmem %s0, %s184
          %s186 = smul.u32 32, %s11
        $region36: #{mlp_forward.1} parent=31 // pred_fallthru
          _
      $region32: #{mlp_forward.1} parent=5 // pred_fallthru
        _
      %p187 = scmp.le.s32.totalorder 1, %s11
      %p188 = scmp.lt.s32.totalorder %s11, 3
      %p189 = pnand %p187, %p188
      %p190 = pneg %p189
      // Predicated region
      $region37: #{mlp_forward.1} parent=5 // pred_check
        _
      $region38: #{mlp_forward.1} parent=5 // pred_check_branch
        %192 = sbr.rel (%p189) target = $region40
      $region39: #{mlp_forward.1} parent=5 // pred_region
        %s193 = ssub.s32 %s11, 1
        %s194 = smul.u32 32, %s16
        %p195 = scmp.lt.s32.totalorder %s194, 63
        %s196 = scalar_select %p195, %s194, 63
        %s197 = smul.addr %s196, 8
        %s198 = scalar_lea.vmem %s0, %s197
        %p199 = pneg %p37
        %p200 = pneg %p34
        %p201 = pneg %p58
        %p202 = pneg %p55
        %p203 = pneg %p79
        %p204 = pneg %p76
        %p205 = pneg %p100
        %p206 = pneg %p97
        %p207 = pneg %p121
        %p208 = pneg %p118
        %p209 = pneg %p147
        %p210 = pneg %p144
        %s211 = sand.u32 %s134, 1
        %s212 = sand.u32 %s134, 1
        %s213 = smul.addr %s212, 64
        %s214 = scalar_lea.vmem [#allocation2], %s213
        %s215 = smul.u32 32, %s16
        %p216 = scmp.lt.s32.totalorder %s215, 63
        %s217 = scalar_select %p216, %s215, 63
        %s218 = smul.addr %s217, 8
        %s219 = scalar_lea.vmem %s0, %s218
        %s220 = smul.u32 32, %s16
        %s221 = smul.u32 2, %s16
        %v223 = vld [vmem:[%s219] sm:$0xff]
        %v224 = vld [vmem:[%s219 + $0x8] sm:$0xff]
        %v225 = vld [vmem:[%s219 + $0x10] sm:$0xff]
        %v226 = vld [vmem:[%s219 + $0x18] sm:$0xff]
        %v227 = vld [vmem:[%s219 + $0x20] sm:$0xff]
        %v228 = vld [vmem:[%s219 + $0x28] sm:$0xff]
        %v229 = vld [vmem:[%s219 + $0x30] sm:$0xff]
        %v230 = vld [vmem:[%s219 + $0x38] sm:$0xff]
        %v231 = vld [vmem:[%s219 + $0x40] sm:$0xff]
        %v232 = vld [vmem:[%s219 + $0x48] sm:$0xff]
        %v233 = vld [vmem:[%s219 + $0x50] sm:$0xff]
        %v234 = vld [vmem:[%s219 + $0x58] sm:$0xff]
        %v235 = vld [vmem:[%s219 + $0x60] sm:$0xff]
        %v236 = vld [vmem:[%s219 + $0x68] sm:$0xff]
        %v237 = vld [vmem:[%s219 + $0x70] sm:$0xff]
        %v238 = vld [vmem:[%s219 + $0x78] sm:$0xff]
        %v239 = vld [vmem:[%s219 + $0x80] sm:$0xff]
        %v240 = vld [vmem:[%s219 + $0x88] sm:$0xff]
        %v241 = vld [vmem:[%s219 + $0x90] sm:$0xff]
        %v242 = vld [vmem:[%s219 + $0x98] sm:$0xff]
        %v243 = vld [vmem:[%s219 + $0xa0] sm:$0xff]
        %v244 = vld [vmem:[%s219 + $0xa8] sm:$0xff]
        %v245 = vld [vmem:[%s219 + $0xb0] sm:$0xff]
        %v246 = vld [vmem:[%s219 + $0xb8] sm:$0xff]
        %v247 = vld [vmem:[%s219 + $0xc0] sm:$0xff]
        %v248 = vld [vmem:[%s219 + $0xc8] sm:$0xff]
        %v249 = vld [vmem:[%s219 + $0xd0] sm:$0xff]
        %v250 = vld [vmem:[%s219 + $0xd8] sm:$0xff]
        %v251 = vld [vmem:[%s219 + $0xe0] sm:$0xff]
        %v252 = vld [vmem:[%s219 + $0xe8] sm:$0xff]
        %v253 = vld [vmem:[%s219 + $0xf0] sm:$0xff]
        %v254 = vld [vmem:[%s219 + $0xf8] sm:$0xff]
        %v255 = vpack.c.bf16 %v224, %v223
        %v256 = vpack.c.bf16 %v226, %v225
        %v257 = vpack.c.bf16 %v228, %v227
        %v258 = vpack.c.bf16 %v230, %v229
        %v259 = vpack.c.bf16 %v232, %v231
        %v260 = vpack.c.bf16 %v234, %v233
        %v261 = vpack.c.bf16 %v236, %v235
        %v262 = vpack.c.bf16 %v238, %v237
        %v263 = vpack.c.bf16 %v240, %v239
        %v264 = vpack.c.bf16 %v242, %v241
        %v265 = vpack.c.bf16 %v244, %v243
        %v266 = vpack.c.bf16 %v246, %v245
        %v267 = vpack.c.bf16 %v248, %v247
        %v268 = vpack.c.bf16 %v250, %v249
        %v269 = vpack.c.bf16 %v252, %v251
        %v270 = vpack.c.bf16 %v254, %v253
        %v271 = vld [vmem:[%s1] sm:$0xf]
        %v272 = vld [vmem:[%s1 + $0x4] sm:$0xf]
        %v273 = vld [vmem:[%s1 + $0x8] sm:$0xf]
        %v274 = vld [vmem:[%s1 + $0xc] sm:$0xf]
        %v275 = vld [vmem:[%s1 + $0x10] sm:$0xf]
        %v276 = vld [vmem:[%s1 + $0x14] sm:$0xf]
        %v277 = vld [vmem:[%s1 + $0x18] sm:$0xf]
        %v278 = vld [vmem:[%s1 + $0x1c] sm:$0xf]
        %v279 = vld [vmem:[%s3] sm:$0xf]
        %v280 = vld [vmem:[%s3 + $0x4] sm:$0xf]
        %v281 = vld [vmem:[%s3 + $0x8] sm:$0xf]
        %v282 = vld [vmem:[%s3 + $0xc] sm:$0xf]
        %v283 = vld [vmem:[%s2] sm:$0xff]
        %v284 = vld [vmem:[%s2 + $0x8] sm:$0xff]
        %v285 = vld [vmem:[%s2 + $0x10] sm:$0xff]
        %v286 = vld [vmem:[%s2 + $0x18] sm:$0xff]
        %v287 = vld [vmem:[%s2 + $0x20] sm:$0xff]
        %v288 = vld [vmem:[%s2 + $0x28] sm:$0xff]
        %v289 = vld [vmem:[%s2 + $0x30] sm:$0xff]
        %v290 = vld [vmem:[%s2 + $0x38] sm:$0xff]
        %292 = vset.pattern.permute.xlu0 0
        %293 = vperm.xlu0 %292, %v283
        %v294 = vpop.permute.xlu0 %293
        %297 = vset.pattern.permute.xlu0 0
        %298 = vperm.xlu0 %297, %v284
        %v299 = vpop.permute.xlu0 %298
        %302 = vset.pattern.permute.xlu0 0
        %303 = vperm.xlu0 %302, %v285
        %v304 = vpop.permute.xlu0 %303
        %307 = vset.pattern.permute.xlu0 0
        %308 = vperm.xlu0 %307, %v286
        %v309 = vpop.permute.xlu0 %308
        %312 = vset.pattern.permute.xlu0 0
        %313 = vperm.xlu0 %312, %v287
        %v314 = vpop.permute.xlu0 %313
        %317 = vset.pattern.permute.xlu0 0
        %318 = vperm.xlu0 %317, %v288
        %v319 = vpop.permute.xlu0 %318
        %322 = vset.pattern.permute.xlu0 0
        %323 = vperm.xlu0 %322, %v289
        %v324 = vpop.permute.xlu0 %323
        %327 = vset.pattern.permute.xlu0 0
        %328 = vperm.xlu0 %327, %v290
        %v329 = vpop.permute.xlu0 %328
        %v339 = vunpack.c.l.b16 %v271
        %v340 = vunpack.c.l.b16 %v272
        %v341 = vunpack.c.l.b16 %v273
        %v342 = vunpack.c.l.b16 %v274
        %v343 = vunpack.c.l.b16 %v275
        %v344 = vunpack.c.l.b16 %v276
        %v345 = vunpack.c.l.b16 %v277
        %v346 = vunpack.c.l.b16 %v278
        %v347 = vpack.c.b16 %v340, %v339
        %v348 = vpack.c.b16 %v342, %v341
        %v349 = vpack.c.b16 %v344, %v343
        %v350 = vpack.c.b16 %v346, %v345
        %vm351 = vcmask 261120
        %v353 = vsel %vm351, %v347, 0
        %v356 = vsel %vm351, %v348, 0
        %v359 = vsel %vm351, %v349, 0
        %v362 = vsel %vm351, %v350, 0
        %v365 = vsel %vm351, %v255, 0
        %v368 = vsel %vm351, %v256, 0
        %v371 = vsel %vm351, %v257, 0
        %v374 = vsel %vm351, %v258, 0
        %v377 = vsel %vm351, %v259, 0
        %v380 = vsel %vm351, %v260, 0
        %v383 = vsel %vm351, %v261, 0
        %v386 = vsel %vm351, %v262, 0
        %v389 = vsel %vm351, %v263, 0
        %v392 = vsel %vm351, %v264, 0
        %v395 = vsel %vm351, %v265, 0
        %v398 = vsel %vm351, %v266, 0
        %v401 = vsel %vm351, %v267, 0
        %v404 = vsel %vm351, %v268, 0
        %v407 = vsel %vm351, %v269, 0
        %v410 = vsel %vm351, %v270, 0
        %412 = vmatprep.subr.bf16.mxu0 0
        %413 = vmatpush1.bf16.xpose.msra.mxu0 %v365
        %414 = vmatprep.subr.bf16.mxu0 0
        %415 = vmatpush1.bf16.xpose.msra.mxu0 %v368
        %416 = vmatprep.subr.bf16.mxu0 0
        %417 = vmatpush1.bf16.xpose.msra.mxu0 %v371
        %418 = vmatprep.subr.bf16.mxu0 0
        %419 = vmatpush1.bf16.xpose.msra.mxu0 %v374
        %420 = vmatprep.subr.bf16.mxu0 0
        %421 = vmatpush1.bf16.xpose.msra.mxu0 %v377
        %422 = vmatprep.subr.bf16.mxu0 0
        %423 = vmatpush1.bf16.xpose.msra.mxu0 %v380
        %424 = vmatprep.subr.bf16.mxu0 0
        %425 = vmatpush1.bf16.xpose.msra.mxu0 %v383
        %426 = vmatprep.subr.bf16.mxu0 0
        %427 = vmatpush1.bf16.xpose.msra.mxu0 %v386
        %428 = vmatprep.subr.bf16.mxu0 0
        %429 = vmatpush1.bf16.xpose.msra.mxu0 %v389
        %430 = vmatprep.subr.bf16.mxu0 0
        %431 = vmatpush1.bf16.xpose.msra.mxu0 %v392
        %432 = vmatprep.subr.bf16.mxu0 0
        %433 = vmatpush1.bf16.xpose.msra.mxu0 %v395
        %434 = vmatprep.subr.bf16.mxu0 0
        %435 = vmatpush1.bf16.xpose.msra.mxu0 %v398
        %436 = vmatprep.subr.bf16.mxu0 0
        %437 = vmatpush1.bf16.xpose.msra.mxu0 %v401
        %438 = vmatprep.subr.bf16.mxu0 0
        %439 = vmatpush1.bf16.xpose.msra.mxu0 %v404
        %440 = vmatprep.subr.bf16.mxu0 0
        %441 = vmatpush1.bf16.xpose.msra.mxu0 %v407
        %442 = vmatprep.subr.bf16.mxu0 0
        %443 = vmatpush1.bf16.xpose.msra.mxu0 %v410
        %444 = vmatprep.mubr.bf16.mxu0 0
        %445 = vmatmul.mubr.bf16.gmra.mrb[0].mxu0 %v353
        %v446 = vpop.f32.mrb[0].mxu0
        %v447 = vadd.f32 %v294, %v446
        %v448 = vpop.f32.mrb[0].mxu0
        %v449 = vadd.f32 %v294, %v448
        %v450 = vpop.f32.mrb[0].mxu0
        %v451 = vadd.f32 %v299, %v450
        %v452 = vpop.f32.mrb[0].mxu0
        %v453 = vadd.f32 %v299, %v452
        %454 = vmatprep.mubr.bf16.mxu0 0
        %455 = vmatmul.mubr.bf16.gmra.mrb[0].mxu0 %v356
        %v456 = vpop.f32.mrb[0].mxu0
        %v457 = vadd.f32 %v304, %v456
        %v458 = vpop.f32.mrb[0].mxu0
        %v459 = vadd.f32 %v304, %v458
        %v460 = vpop.f32.mrb[0].mxu0
        %v461 = vadd.f32 %v309, %v460
        %v462 = vpop.f32.mrb[0].mxu0
        %v463 = vadd.f32 %v309, %v462
        %464 = vmatprep.mubr.bf16.mxu0 0
        %465 = vmatmul.mubr.bf16.gmra.mrb[0].mxu0 %v359
        %v466 = vpop.f32.mrb[0].mxu0
        %v467 = vadd.f32 %v314, %v466
        %v468 = vpop.f32.mrb[0].mxu0
        %v469 = vadd.f32 %v314, %v468
        %v470 = vpop.f32.mrb[0].mxu0
        %v471 = vadd.f32 %v319, %v470
        %v472 = vpop.f32.mrb[0].mxu0
        %v473 = vadd.f32 %v319, %v472
        %474 = vmatprep.mubr.bf16.mxu0 0
        %475 = vmatmul.mubr.bf16.gmra.mrb[0].mxu0 %v362
        %v476 = vpop.f32.mrb[0].mxu0
        %v477 = vadd.f32 %v324, %v476
        %v478 = vpop.f32.mrb[0].mxu0
        %v479 = vadd.f32 %v324, %v478
        %v480 = vpop.f32.mrb[0].mxu0
        %v481 = vadd.f32 %v329, %v480
        %v482 = vpop.f32.mrb[0].mxu0
        %v483 = vadd.f32 %v329, %v482
        %484 = vdwg.mxu0
        %v485 = vmul.f32 %v447, 0.5
        %v486 = vmul.f32 %v449, 0.5
        %v487 = vmul.f32 %v451, 0.5
        %v488 = vmul.f32 %v453, 0.5
        %v489 = vmul.f32 %v457, 0.5
        %v490 = vmul.f32 %v459, 0.5
        %v491 = vmul.f32 %v461, 0.5
        %v492 = vmul.f32 %v463, 0.5
        %v493 = vmul.f32 %v467, 0.5
        %v494 = vmul.f32 %v469, 0.5
        %v495 = vmul.f32 %v471, 0.5
        %v496 = vmul.f32 %v473, 0.5
        %v497 = vmul.f32 %v477, 0.5
        %v498 = vmul.f32 %v479, 0.5
        %v499 = vmul.f32 %v481, 0.5
        %v500 = vmul.f32 %v483, 0.5
        %v501 = vmul.f32 %v447, 0.70710677
        %v502 = vmul.f32 %v449, 0.70710677
        %v503 = vmul.f32 %v451, 0.70710677
        %v504 = vmul.f32 %v453, 0.70710677
        %v505 = vmul.f32 %v457, 0.70710677
        %v506 = vmul.f32 %v459, 0.70710677
        %v507 = vmul.f32 %v461, 0.70710677
        %v508 = vmul.f32 %v463, 0.70710677
        %v509 = vmul.f32 %v467, 0.70710677
        %v510 = vmul.f32 %v469, 0.70710677
        %v511 = vmul.f32 %v471, 0.70710677
        %v512 = vmul.f32 %v473, 0.70710677
        %v513 = vmul.f32 %v477, 0.70710677
        %v514 = vmul.f32 %v479, 0.70710677
        %v515 = vmul.f32 %v481, 0.70710677
        %v516 = vmul.f32 %v483, 0.70710677
        %v517 = vand.u32 2147483647, %v501
        %v518 = vand.u32 2147483647, %v502
        %v519 = vand.u32 2147483647, %v503
        %v520 = vand.u32 2147483647, %v504
        %v521 = vand.u32 2147483647, %v505
        %v522 = vand.u32 2147483647, %v506
        %v523 = vand.u32 2147483647, %v507
        %v524 = vand.u32 2147483647, %v508
        %v525 = vand.u32 2147483647, %v509
        %v526 = vand.u32 2147483647, %v510
        %v527 = vand.u32 2147483647, %v511
        %v528 = vand.u32 2147483647, %v512
        %v529 = vand.u32 2147483647, %v513
        %v530 = vand.u32 2147483647, %v514
        %v531 = vand.u32 2147483647, %v515
        %v532 = vand.u32 2147483647, %v516
        %v533 = vmul.f32 %v517, 0.3275911
        %v534 = vmul.f32 %v518, 0.3275911
        %v535 = vmul.f32 %v519, 0.3275911
        %v536 = vmul.f32 %v520, 0.3275911
        %v537 = vmul.f32 %v521, 0.3275911
        %v538 = vmul.f32 %v522, 0.3275911
        %v539 = vmul.f32 %v523, 0.3275911
        %v540 = vmul.f32 %v524, 0.3275911
        %v541 = vmul.f32 %v525, 0.3275911
        %v542 = vmul.f32 %v526, 0.3275911
        %v543 = vmul.f32 %v527, 0.3275911
        %v544 = vmul.f32 %v528, 0.3275911
        %v545 = vmul.f32 %v529, 0.3275911
        %v546 = vmul.f32 %v530, 0.3275911
        %v547 = vmul.f32 %v531, 0.3275911
        %v548 = vmul.f32 %v532, 0.3275911
        %v549 = vadd.f32 %v533, 1.0
        %v550 = vadd.f32 %v534, 1.0
        %v551 = vadd.f32 %v535, 1.0
        %v552 = vadd.f32 %v536, 1.0
        %v553 = vadd.f32 %v537, 1.0
        %v554 = vadd.f32 %v538, 1.0
        %v555 = vadd.f32 %v539, 1.0
        %v556 = vadd.f32 %v540, 1.0
        %v557 = vadd.f32 %v541, 1.0
        %v558 = vadd.f32 %v542, 1.0
        %v559 = vadd.f32 %v543, 1.0
        %v560 = vadd.f32 %v544, 1.0
        %v561 = vadd.f32 %v545, 1.0
        %v562 = vadd.f32 %v546, 1.0
        %v563 = vadd.f32 %v547, 1.0
        %v564 = vadd.f32 %v548, 1.0
        %v565 = vrcp.pop %v549
        %v566 = vrcp.pop %v550
        %v567 = vrcp.pop %v551
        %v568 = vrcp.pop %v552
        %v569 = vrcp.pop %v553
        %v570 = vrcp.pop %v554
        %v571 = vrcp.pop %v555
        %v572 = vrcp.pop %v556
        %v573 = vrcp.pop %v557
        %v574 = vrcp.pop %v558
        %v575 = vrcp.pop %v559
        %v576 = vrcp.pop %v560
        %v577 = vrcp.pop %v561
        %v578 = vrcp.pop %v562
        %v579 = vrcp.pop %v563
        %v580 = vrcp.pop %v564
        %v581 = vmul.f32 %v565, 1.0614054
        %v582 = vmul.f32 %v566, 1.0614054
        %v583 = vmul.f32 %v567, 1.0614054
        %v584 = vmul.f32 %v568, 1.0614054
        %v585 = vmul.f32 %v569, 1.0614054
        %v586 = vmul.f32 %v570, 1.0614054
        %v587 = vmul.f32 %v571, 1.0614054
        %v588 = vmul.f32 %v572, 1.0614054
        %v589 = vmul.f32 %v573, 1.0614054
        %v590 = vmul.f32 %v574, 1.0614054
        %v591 = vmul.f32 %v575, 1.0614054
        %v592 = vmul.f32 %v576, 1.0614054
        %v593 = vmul.f32 %v577, 1.0614054
        %v594 = vmul.f32 %v578, 1.0614054
        %v595 = vmul.f32 %v579, 1.0614054
        %v596 = vmul.f32 %v580, 1.0614054
        %v597 = vadd.f32 %v581, -1.4531521
        %v598 = vadd.f32 %v582, -1.4531521
        %v599 = vadd.f32 %v583, -1.4531521
        %v600 = vadd.f32 %v584, -1.4531521
        %v601 = vadd.f32 %v585, -1.4531521
        %v602 = vadd.f32 %v586, -1.4531521
        %v603 = vadd.f32 %v587, -1.4531521
        %v604 = vadd.f32 %v588, -1.4531521
        %v605 = vadd.f32 %v589, -1.4531521
        %v606 = vadd.f32 %v590, -1.4531521
        %v607 = vadd.f32 %v591, -1.4531521
        %v608 = vadd.f32 %v592, -1.4531521
        %v609 = vadd.f32 %v593, -1.4531521
        %v610 = vadd.f32 %v594, -1.4531521
        %v611 = vadd.f32 %v595, -1.4531521
        %v612 = vadd.f32 %v596, -1.4531521
        %v613 = vmul.f32 %v597, %v565
        %v614 = vmul.f32 %v598, %v566
        %v615 = vmul.f32 %v599, %v567
        %v616 = vmul.f32 %v600, %v568
        %v617 = vmul.f32 %v601, %v569
        %v618 = vmul.f32 %v602, %v570
        %v619 = vmul.f32 %v603, %v571
        %v620 = vmul.f32 %v604, %v572
        %v621 = vmul.f32 %v605, %v573
        %v622 = vmul.f32 %v606, %v574
        %v623 = vmul.f32 %v607, %v575
        %v624 = vmul.f32 %v608, %v576
        %v625 = vmul.f32 %v609, %v577
        %v626 = vmul.f32 %v610, %v578
        %v627 = vmul.f32 %v611, %v579
        %v628 = vmul.f32 %v612, %v580
        %v629 = vadd.f32 %v613, 1.4214138
        %v630 = vadd.f32 %v614, 1.4214138
        %v631 = vadd.f32 %v615, 1.4214138
        %v632 = vadd.f32 %v616, 1.4214138
        %v633 = vadd.f32 %v617, 1.4214138
        %v634 = vadd.f32 %v618, 1.4214138
        %v635 = vadd.f32 %v619, 1.4214138
        %v636 = vadd.f32 %v620, 1.4214138
        %v637 = vadd.f32 %v621, 1.4214138
        %v638 = vadd.f32 %v622, 1.4214138
        %v639 = vadd.f32 %v623, 1.4214138
        %v640 = vadd.f32 %v624, 1.4214138
        %v641 = vadd.f32 %v625, 1.4214138
        %v642 = vadd.f32 %v626, 1.4214138
        %v643 = vadd.f32 %v627, 1.4214138
        %v644 = vadd.f32 %v628, 1.4214138
        %v645 = vmul.f32 %v629, %v565
        %v646 = vmul.f32 %v630, %v566
        %v647 = vmul.f32 %v631, %v567
        %v648 = vmul.f32 %v632, %v568
        %v649 = vmul.f32 %v633, %v569
        %v650 = vmul.f32 %v634, %v570
        %v651 = vmul.f32 %v635, %v571
        %v652 = vmul.f32 %v636, %v572
        %v653 = vmul.f32 %v637, %v573
        %v654 = vmul.f32 %v638, %v574
        %v655 = vmul.f32 %v639, %v575
        %v656 = vmul.f32 %v640, %v576
        %v657 = vmul.f32 %v641, %v577
        %v658 = vmul.f32 %v642, %v578
        %v659 = vmul.f32 %v643, %v579
        %v660 = vmul.f32 %v644, %v580
        %v661 = vadd.f32 %v645, -0.28449672
        %v662 = vadd.f32 %v646, -0.28449672
        %v663 = vadd.f32 %v647, -0.28449672
        %v664 = vadd.f32 %v648, -0.28449672
        %v665 = vadd.f32 %v649, -0.28449672
        %v666 = vadd.f32 %v650, -0.28449672
        %v667 = vadd.f32 %v651, -0.28449672
        %v668 = vadd.f32 %v652, -0.28449672
        %v669 = vadd.f32 %v653, -0.28449672
        %v670 = vadd.f32 %v654, -0.28449672
        %v671 = vadd.f32 %v655, -0.28449672
        %v672 = vadd.f32 %v656, -0.28449672
        %v673 = vadd.f32 %v657, -0.28449672
        %v674 = vadd.f32 %v658, -0.28449672
        %v675 = vadd.f32 %v659, -0.28449672
        %v676 = vadd.f32 %v660, -0.28449672
        %v677 = vmul.f32 %v661, %v565
        %v678 = vmul.f32 %v662, %v566
        %v679 = vmul.f32 %v663, %v567
        %v680 = vmul.f32 %v664, %v568
        %v681 = vmul.f32 %v665, %v569
        %v682 = vmul.f32 %v666, %v570
        %v683 = vmul.f32 %v667, %v571
        %v684 = vmul.f32 %v668, %v572
        %v685 = vmul.f32 %v669, %v573
        %v686 = vmul.f32 %v670, %v574
        %v687 = vmul.f32 %v671, %v575
        %v688 = vmul.f32 %v672, %v576
        %v689 = vmul.f32 %v673, %v577
        %v690 = vmul.f32 %v674, %v578
        %v691 = vmul.f32 %v675, %v579
        %v692 = vmul.f32 %v676, %v580
        %v693 = vadd.f32 %v677, 0.2548296
        %v694 = vadd.f32 %v678, 0.2548296
        %v695 = vadd.f32 %v679, 0.2548296
        %v696 = vadd.f32 %v680, 0.2548296
        %v697 = vadd.f32 %v681, 0.2548296
        %v698 = vadd.f32 %v682, 0.2548296
        %v699 = vadd.f32 %v683, 0.2548296
        %v700 = vadd.f32 %v684, 0.2548296
        %v701 = vadd.f32 %v685, 0.2548296
        %v702 = vadd.f32 %v686, 0.2548296
        %v703 = vadd.f32 %v687, 0.2548296
        %v704 = vadd.f32 %v688, 0.2548296
        %v705 = vadd.f32 %v689, 0.2548296
        %v706 = vadd.f32 %v690, 0.2548296
        %v707 = vadd.f32 %v691, 0.2548296
        %v708 = vadd.f32 %v692, 0.2548296
        %v709 = vmul.f32 %v693, %v565
        %v710 = vmul.f32 %v694, %v566
        %v711 = vmul.f32 %v695, %v567
        %v712 = vmul.f32 %v696, %v568
        %v713 = vmul.f32 %v697, %v569
        %v714 = vmul.f32 %v698, %v570
        %v715 = vmul.f32 %v699, %v571
        %v716 = vmul.f32 %v700, %v572
        %v717 = vmul.f32 %v701, %v573
        %v718 = vmul.f32 %v702, %v574
        %v719 = vmul.f32 %v703, %v575
        %v720 = vmul.f32 %v704, %v576
        %v721 = vmul.f32 %v705, %v577
        %v722 = vmul.f32 %v706, %v578
        %v723 = vmul.f32 %v707, %v579
        %v724 = vmul.f32 %v708, %v580
        %v725 = vsub.f32 0.0, %v517
        %v726 = vsub.f32 0.0, %v518
        %v727 = vsub.f32 0.0, %v519
        %v728 = vsub.f32 0.0, %v520
        %v729 = vsub.f32 0.0, %v521
        %v730 = vsub.f32 0.0, %v522
        %v731 = vsub.f32 0.0, %v523
        %v732 = vsub.f32 0.0, %v524
        %v733 = vsub.f32 0.0, %v525
        %v734 = vsub.f32 0.0, %v526
        %v735 = vsub.f32 0.0, %v527
        %v736 = vsub.f32 0.0, %v528
        %v737 = vsub.f32 0.0, %v529
        %v738 = vsub.f32 0.0, %v530
        %v739 = vsub.f32 0.0, %v531
        %v740 = vsub.f32 0.0, %v532
        %v741 = vmul.f32 %v725, %v517
        %v742 = vmul.f32 %v726, %v518
        %v743 = vmul.f32 %v727, %v519
        %v744 = vmul.f32 %v728, %v520
        %v745 = vmul.f32 %v729, %v521
        %v746 = vmul.f32 %v730, %v522
        %v747 = vmul.f32 %v731, %v523
        %v748 = vmul.f32 %v732, %v524
        %v749 = vmul.f32 %v733, %v525
        %v750 = vmul.f32 %v734, %v526
        %v751 = vmul.f32 %v735, %v527
        %v752 = vmul.f32 %v736, %v528
        %v753 = vmul.f32 %v737, %v529
        %v754 = vmul.f32 %v738, %v530
        %v755 = vmul.f32 %v739, %v531
        %v756 = vmul.f32 %v740, %v532
        %v757 = vmul.f32 %v741, 1.442695
        %v758 = vpow.pop %v757
        %v759 = vmul.f32 %v742, 1.442695
        %v760 = vpow.pop %v759
        %v761 = vmul.f32 %v743, 1.442695
        %v762 = vpow.pop %v761
        %v763 = vmul.f32 %v744, 1.442695
        %v764 = vpow.pop %v763
        %v765 = vmul.f32 %v745, 1.442695
        %v766 = vpow.pop %v765
        %v767 = vmul.f32 %v746, 1.442695
        %v768 = vpow.pop %v767
        %v769 = vmul.f32 %v747, 1.442695
        %v770 = vpow.pop %v769
        %v771 = vmul.f32 %v748, 1.442695
        %v772 = vpow.pop %v771
        %v773 = vmul.f32 %v749, 1.442695
        %v774 = vpow.pop %v773
        %v775 = vmul.f32 %v750, 1.442695
        %v776 = vpow.pop %v775
        %v777 = vmul.f32 %v751, 1.442695
        %v778 = vpow.pop %v777
        %v779 = vmul.f32 %v752, 1.442695
        %v780 = vpow.pop %v779
        %v781 = vmul.f32 %v753, 1.442695
        %v782 = vpow.pop %v781
        %v783 = vmul.f32 %v754, 1.442695
        %v784 = vpow.pop %v783
        %v785 = vmul.f32 %v755, 1.442695
        %v786 = vpow.pop %v785
        %v787 = vmul.f32 %v756, 1.442695
        %v788 = vpow.pop %v787
        %v789 = vmul.f32 %v709, %v758
        %v790 = vmul.f32 %v710, %v760
        %v791 = vmul.f32 %v711, %v762
        %v792 = vmul.f32 %v712, %v764
        %v793 = vmul.f32 %v713, %v766
        %v794 = vmul.f32 %v714, %v768
        %v795 = vmul.f32 %v715, %v770
        %v796 = vmul.f32 %v716, %v772
        %v797 = vmul.f32 %v717, %v774
        %v798 = vmul.f32 %v718, %v776
        %v799 = vmul.f32 %v719, %v778
        %v800 = vmul.f32 %v720, %v780
        %v801 = vmul.f32 %v721, %v782
        %v802 = vmul.f32 %v722, %v784
        %v803 = vmul.f32 %v723, %v786
        %v804 = vmul.f32 %v724, %v788
        %v805 = vsub.f32 1.0, %v789
        %v806 = vsub.f32 1.0, %v790
        %v807 = vsub.f32 1.0, %v791
        %v808 = vsub.f32 1.0, %v792
        %v809 = vsub.f32 1.0, %v793
        %v810 = vsub.f32 1.0, %v794
        %v811 = vsub.f32 1.0, %v795
        %v812 = vsub.f32 1.0, %v796
        %v813 = vsub.f32 1.0, %v797
        %v814 = vsub.f32 1.0, %v798
        %v815 = vsub.f32 1.0, %v799
        %v816 = vsub.f32 1.0, %v800
        %v817 = vsub.f32 1.0, %v801
        %v818 = vsub.f32 1.0, %v802
        %v819 = vsub.f32 1.0, %v803
        %v820 = vsub.f32 1.0, %v804
        %vm821 = vcmp.ge.f32.partialorder %v501, 0.0
        %vm822 = vcmp.ge.f32.partialorder %v502, 0.0
        %vm823 = vcmp.ge.f32.partialorder %v503, 0.0
        %vm824 = vcmp.ge.f32.partialorder %v504, 0.0
        %vm825 = vcmp.ge.f32.partialorder %v505, 0.0
        %vm826 = vcmp.ge.f32.partialorder %v506, 0.0
        %vm827 = vcmp.ge.f32.partialorder %v507, 0.0
        %vm828 = vcmp.ge.f32.partialorder %v508, 0.0
        %vm829 = vcmp.ge.f32.partialorder %v509, 0.0
        %vm830 = vcmp.ge.f32.partialorder %v510, 0.0
        %vm831 = vcmp.ge.f32.partialorder %v511, 0.0
        %vm832 = vcmp.ge.f32.partialorder %v512, 0.0
        %vm833 = vcmp.ge.f32.partialorder %v513, 0.0
        %vm834 = vcmp.ge.f32.partialorder %v514, 0.0
        %vm835 = vcmp.ge.f32.partialorder %v515, 0.0
        %vm836 = vcmp.ge.f32.partialorder %v516, 0.0
        %v837 = vsub.f32 0.0, %v805
        %v838 = vsub.f32 0.0, %v806
        %v839 = vsub.f32 0.0, %v807
        %v840 = vsub.f32 0.0, %v808
        %v841 = vsub.f32 0.0, %v809
        %v842 = vsub.f32 0.0, %v810
        %v843 = vsub.f32 0.0, %v811
        %v844 = vsub.f32 0.0, %v812
        %v845 = vsub.f32 0.0, %v813
        %v846 = vsub.f32 0.0, %v814
        %v847 = vsub.f32 0.0, %v815
        %v848 = vsub.f32 0.0, %v816
        %v849 = vsub.f32 0.0, %v817
        %v850 = vsub.f32 0.0, %v818
        %v851 = vsub.f32 0.0, %v819
        %v852 = vsub.f32 0.0, %v820
        %v853 = vsel %vm821, %v805, %v837
        %v854 = vsel %vm822, %v806, %v838
        %v855 = vsel %vm823, %v807, %v839
        %v856 = vsel %vm824, %v808, %v840
        %v857 = vsel %vm825, %v809, %v841
        %v858 = vsel %vm826, %v810, %v842
        %v859 = vsel %vm827, %v811, %v843
        %v860 = vsel %vm828, %v812, %v844
        %v861 = vsel %vm829, %v813, %v845
        %v862 = vsel %vm830, %v814, %v846
        %v863 = vsel %vm831, %v815, %v847
        %v864 = vsel %vm832, %v816, %v848
        %v865 = vsel %vm833, %v817, %v849
        %v866 = vsel %vm834, %v818, %v850
        %v867 = vsel %vm835, %v819, %v851
        %v868 = vsel %vm836, %v820, %v852
        %v869 = vadd.f32 %v853, 1.0
        %v870 = vadd.f32 %v854, 1.0
        %v871 = vadd.f32 %v855, 1.0
        %v872 = vadd.f32 %v856, 1.0
        %v873 = vadd.f32 %v857, 1.0
        %v874 = vadd.f32 %v858, 1.0
        %v875 = vadd.f32 %v859, 1.0
        %v876 = vadd.f32 %v860, 1.0
        %v877 = vadd.f32 %v861, 1.0
        %v878 = vadd.f32 %v862, 1.0
        %v879 = vadd.f32 %v863, 1.0
        %v880 = vadd.f32 %v864, 1.0
        %v881 = vadd.f32 %v865, 1.0
        %v882 = vadd.f32 %v866, 1.0
        %v883 = vadd.f32 %v867, 1.0
        %v884 = vadd.f32 %v868, 1.0
        %v885 = vmul.f32 %v485, %v869
        %v886 = vmul.f32 %v486, %v870
        %v887 = vmul.f32 %v487, %v871
        %v888 = vmul.f32 %v488, %v872
        %v889 = vmul.f32 %v489, %v873
        %v890 = vmul.f32 %v490, %v874
        %v891 = vmul.f32 %v491, %v875
        %v892 = vmul.f32 %v492, %v876
        %v893 = vmul.f32 %v493, %v877
        %v894 = vmul.f32 %v494, %v878
        %v895 = vmul.f32 %v495, %v879
        %v896 = vmul.f32 %v496, %v880
        %v897 = vmul.f32 %v497, %v881
        %v898 = vmul.f32 %v498, %v882
        %v899 = vmul.f32 %v499, %v883
        %v900 = vmul.f32 %v500, %v884
        %v901 = vpack.c.bf16 %v887, %v885
        %v902 = vpack.c.bf16 %v888, %v886
        %v903 = vpack.c.bf16 %v891, %v889
        %v904 = vpack.c.bf16 %v892, %v890
        %v905 = vpack.c.bf16 %v895, %v893
        %v906 = vpack.c.bf16 %v896, %v894
        %v907 = vpack.c.bf16 %v899, %v897
        %v908 = vpack.c.bf16 %v900, %v898
        %v909 = vld [vmem:[%s4] sm:$0xff]
        %v910 = vld [vmem:[%s4 + $0x8] sm:$0xff]
        %v911 = vld [vmem:[%s4 + $0x10] sm:$0xff]
        %v912 = vld [vmem:[%s4 + $0x18] sm:$0xff]
        %914 = vset.pattern.permute.xlu0 0
        %915 = vperm.xlu0 %914, %v909
        %v916 = vpop.permute.xlu0 %915
        %919 = vset.pattern.permute.xlu0 0
        %920 = vperm.xlu0 %919, %v910
        %v921 = vpop.permute.xlu0 %920
        %924 = vset.pattern.permute.xlu0 0
        %925 = vperm.xlu0 %924, %v911
        %v926 = vpop.permute.xlu0 %925
        %929 = vset.pattern.permute.xlu0 0
        %930 = vperm.xlu0 %929, %v912
        %v931 = vpop.permute.xlu0 %930
        %v937 = vunpack.c.l.b16 %v279
        %v938 = vunpack.c.l.b16 %v280
        %v939 = vunpack.c.l.b16 %v281
        %v940 = vunpack.c.l.b16 %v282
        %v941 = vpack.c.b16 %v938, %v937
        %v942 = vpack.c.b16 %v940, %v939
        %vm943 = vcmask 523264
        %v945 = vsel %vm943, %v941, 0
        %v948 = vsel %vm943, %v942, 0
        %950 = vmatprep.subr.bf16.mxu0 %v902
        %951 = vmatpush1.bf16.msra.mxu0 %v901
        %952 = vmatprep.subr.bf16.mxu0 %v904
        %953 = vmatpush1.bf16.msra.mxu0 %v903
        %954 = vmatprep.subr.bf16.mxu0 %v906
        %955 = vmatpush1.bf16.msra.mxu0 %v905
        %956 = vmatprep.subr.bf16.mxu0 %v908
        %957 = vmatpush1.bf16.msra.mxu0 %v907
        %958 = vmatprep.subr.bf16.mxu0 0
        %959 = vmatpush1.bf16.msra.mxu0 0
        %960 = vmatprep.subr.bf16.mxu0 0
        %961 = vmatpush1.bf16.msra.mxu0 0
        %962 = vmatprep.subr.bf16.mxu0 0
        %963 = vmatpush1.bf16.msra.mxu0 0
        %964 = vmatprep.subr.bf16.mxu0 0
        %965 = vmatpush1.bf16.msra.mxu0 0
        %966 = vmatprep.subr.bf16.mxu0 0
        %967 = vmatpush1.bf16.msra.mxu0 0
        %968 = vmatprep.subr.bf16.mxu0 0
        %969 = vmatpush1.bf16.msra.mxu0 0
        %970 = vmatprep.subr.bf16.mxu0 0
        %971 = vmatpush1.bf16.msra.mxu0 0
        %972 = vmatprep.subr.bf16.mxu0 0
        %973 = vmatpush1.bf16.msra.mxu0 0
        %974 = vmatprep.subr.bf16.mxu0 0
        %975 = vmatpush1.bf16.msra.mxu0 0
        %976 = vmatprep.subr.bf16.mxu0 0
        %977 = vmatpush1.bf16.msra.mxu0 0
        %978 = vmatprep.subr.bf16.mxu0 0
        %979 = vmatpush1.bf16.msra.mxu0 0
        %980 = vmatprep.subr.bf16.mxu0 0
        %981 = vmatpush1.bf16.msra.mxu0 0
        %982 = vmatprep.mubr.bf16.mxu0 0
        %983 = vmatmul.mubr.bf16.gmra.mrb[0].mxu0 %v945
        %v984 = vpop.f32.mrb[0].mxu0
        %v985 = vadd.f32 %v916, %v984
        %v986 = vpop.f32.mrb[0].mxu0
        %v987 = vadd.f32 %v916, %v986
        %v988 = vpop.f32.mrb[0].mxu0
        %v989 = vadd.f32 %v921, %v988
        %v990 = vpop.f32.mrb[0].mxu0
        %v991 = vadd.f32 %v921, %v990
        %992 = vmatprep.mubr.bf16.mxu0 0
        %993 = vmatmul.mubr.bf16.gmra.mrb[0].mxu0 %v948
        %v994 = vpop.f32.mrb[0].mxu0
        %v995 = vadd.f32 %v926, %v994
        %v996 = vpop.f32.mrb[0].mxu0
        %v997 = vadd.f32 %v926, %v996
        %v998 = vpop.f32.mrb[0].mxu0
        %v999 = vadd.f32 %v931, %v998
        %v1000 = vpop.f32.mrb[0].mxu0
        %v1001 = vadd.f32 %v931, %v1000
        %1002 = vdwg.mxu0
        %1003 = vst [vmem:[%s214] sm:$0xff] %v985
        %1004 = vst [vmem:[%s214 + $0x8] sm:$0xff] %v987
        %1005 = vst [vmem:[%s214 + $0x10] sm:$0xff] %v989
        %1006 = vst [vmem:[%s214 + $0x18] sm:$0xff] %v991
        %1007 = vst [vmem:[%s214 + $0x20] sm:$0xff] %v995
        %1008 = vst [vmem:[%s214 + $0x28] sm:$0xff] %v997
        %1009 = vst [vmem:[%s214 + $0x30] sm:$0xff] %v999
        %1010 = vst [vmem:[%s214 + $0x38] sm:$0xff] %v1001
        %s1011 = sand.u32 %s134, 1
        %s1012 = sand.u32 %s134, 1
        %s1013 = smul.addr %s1012, 64
        %s1014 = scalar_lea.vmem [#allocation2], %s1013
        // Predicated region
        $region41: #{mlp_forward.1} parent=39 // pred_check
          %p1015 = pneg %p144
        $region42: #{mlp_forward.1} parent=39 // pred_check_branch
          %1017 = sbr.rel (%p1015) target = $region44
        $region43: #{mlp_forward.1} parent=39 // pred_region
          %s1018 = smul.u32 2, %s16
          %s1019 = smul.addr %s1018, 8
          %s1020 = scalar_lea.vmem %s5, %s1019
          // Predicated region
          $region45: #{mlp_forward.1} parent=43 // pred_check
            _
          $region46: #{mlp_forward.1} parent=43 // pred_check_branch
            %1022 = sbr.rel (0) target = $region48
          $region47: #{mlp_forward.1} parent=43 // pred_region
            // Predicated region
            $region49: #{mlp_forward.1} parent=47 // pred_check
              _
            $region50: #{mlp_forward.1} parent=47 // pred_check_branch
              %1024 = sbr.rel (0) target = $region52
            $region51: #{mlp_forward.1} parent=47 // pred_region
              loop: start=0, step=1, limit=1
              $region53: #{mlp_forward.1} parent=51 // loop_pre_header
                _
              $region54: #{mlp_forward.1} parent=51 // loop_header
                %s1026 = sphi 0, %s1030
                %p1027 = scmp.ge.s32.totalorder %s1026, 1
                %s1031 = sphi %s1014, %s1014
                %s1032 = sphi %s1020, %s1020
              $region55: #{mlp_forward.1} parent=51 // loop_header_branch
                %1029 = sbr.rel (%p1027) target = $region59
              $region56: #{mlp_forward.1} parent=51 // loop_body
                %v1033 = vld [vmem:[%s1031] sm:$0xff]
                %1034 = vst [vmem:[%s1032] sm:$0xff] %v1033
                %v1035 = vld [vmem:[%s1031 + $0x8] sm:$0xff]
                %1036 = vst [vmem:[%s1032 + $0x8] sm:$0xff] %v1035
                %v1037 = vld [vmem:[%s1031 + $0x10] sm:$0xff]
                %1038 = vst [vmem:[%s1032 + $0x20] sm:$0xff] %v1037
                %v1039 = vld [vmem:[%s1031 + $0x18] sm:$0xff]
                %1040 = vst [vmem:[%s1032 + $0x28] sm:$0xff] %v1039
                %v1041 = vld [vmem:[%s1031 + $0x20] sm:$0xff]
                %1042 = vst [vmem:[%s1032 + $0x40] sm:$0xff] %v1041
                %v1043 = vld [vmem:[%s1031 + $0x28] sm:$0xff]
                %1044 = vst [vmem:[%s1032 + $0x48] sm:$0xff] %v1043
                %v1045 = vld [vmem:[%s1031 + $0x30] sm:$0xff]
                %1046 = vst [vmem:[%s1032 + $0x60] sm:$0xff] %v1045
                %v1047 = vld [vmem:[%s1031 + $0x38] sm:$0xff]
                %1048 = vst [vmem:[%s1032 + $0x68] sm:$0xff] %v1047
              $region57: #{mlp_forward.1} parent=51 // loop_footer
                %s1030 = sadd.s32 1, %s1026
              $region58: #{mlp_forward.1} parent=51 // loop_footer_branch
                %1025 = sbr.rel target = $region54
              $region59: #{mlp_forward.1} parent=51 // loop_exit
                _
            $region52: #{mlp_forward.1} parent=47 // pred_fallthru
              _
            // Predicated region
            $region60: #{mlp_forward.1} parent=47 // pred_check
              _
            $region61: #{mlp_forward.1} parent=47 // pred_check_branch
              %1050 = sbr.rel target = $region63
            $region62: #{mlp_forward.1} parent=47 // pred_region
              _
            $region63: #{mlp_forward.1} parent=47 // pred_fallthru
              _
          $region48: #{mlp_forward.1} parent=43 // pred_fallthru
            _
          %1051 = vnop
        $region44: #{mlp_forward.1} parent=39 // pred_fallthru
          _
      $region40: #{mlp_forward.1} parent=5 // pred_fallthru
        _
      %p1052 = scmp.le.s32.totalorder 2, %s11
      // Predicated region
      $region64: #{mlp_forward.1} parent=5 // pred_check
        %p1053 = pneg %p1052
      $region65: #{mlp_forward.1} parent=5 // pred_check_branch
        %1055 = sbr.rel (%p1053) target = $region67
      $region66: #{mlp_forward.1} parent=5 // pred_region
        %s1056 = ssub.s32 %s11, 2
        // Predicated region
        $region68: #{mlp_forward.1} parent=66 // pred_check
          %p1057 = pneg %p150
        $region69: #{mlp_forward.1} parent=66 // pred_check_branch
          %1059 = sbr.rel (%p1057) target = $region71
        $region70: #{mlp_forward.1} parent=66 // pred_region
          %s1060 = sand.u32 %s135, 1
          %s1061 = sand.u32 %s135, 1
          %s1062 = smul.addr %s1061, 64
          %s1063 = scalar_lea.vmem [#allocation2], %s1062
        $region71: #{mlp_forward.1} parent=66 // pred_fallthru
          _
      $region67: #{mlp_forward.1} parent=5 // pred_fallthru
        _
    $region6: #{mlp_forward.1} parent=1 // loop_footer
      %s15 = sadd.s32 1, %s11
    $region7: #{mlp_forward.1} parent=1 // loop_footer_branch
      %10 = sbr.rel target = $region3
    $region8: #{mlp_forward.1} parent=1 // loop_exit
      _

</llo_original>
